<compile_context>
chip_gen: v7x
topology: tpu7x:2x2x1
jax: 0.10.0
libtpu: 0.0.40
codegen_flags: <defaults>
</compile_context>

<pallas_src>
import jax
import jax.numpy as jnp
from jax import lax
from jax.experimental import pallas as pl
from jax.experimental.pallas import tpu as pltpu


def _round_up(x, m):
    return (x + m - 1) // m * m


# Finite "minus infinity": exp(-1e30 - m) underflows to exactly 0.0 in f32, and
# fully-masked (batch-padding) rows stay NaN-free.
_NEG_BIG = -1e30


def _make_attention_kernel(s_chunk, n_chunks):
    """Build the kernel closure for a fixed S-chunking (static Python ints)."""

    def kernel(dec_ref, enc_ref, mask_ref, w1t_ref, w2t_ref, vt_ref, out_ref, u_ref):
        TB, S_pad, H = enc_ref.shape

        # Resident weights / per-tile projection (hoisted out of the S-chunk loop).
        w1t = w1t_ref[...]                                          # [H, H] (in, out)
        vt_row = vt_ref[...].astype(jnp.float32).reshape(1, 1, H)   # [1, 1, H] f32
        dec_t = jnp.dot(dec_ref[...], w2t_ref[...],
                        preferred_element_type=jnp.float32)         # [TB, H] f32
        dec_b = dec_t[:, None, :]                                    # [TB, 1, H]

        def chunk_body(c, carry):
            start = c * s_chunk
            if not isinstance(start, int):
                start = pl.multiple_of(start, s_chunk)
            enc_c = enc_ref[:, pl.ds(start, s_chunk), :]             # [TB, sc, H]
            # W1(encoder_outputs) for this chunk: MXU matmul, f32 accumulate.
            # s_chunk is a multiple of 16, so the reshape is a free view (bf16 & f32).
            enc_t = jnp.dot(enc_c.reshape(TB * s_chunk, H), w1t,
                            preferred_element_type=jnp.float32
                            ).reshape(TB, s_chunk, H)
            # u = vt . tanh(enc_t + dec_t): f32 elementwise (EUP tanh) + lane reduce.
            t = jnp.tanh(enc_t + dec_b)
            u_ref[:, pl.ds(start, s_chunk)] = jnp.sum(t * vt_row, axis=-1)
            return carry

        if n_chunks == 1:
            chunk_body(0, 0)
        else:
            lax.fori_loop(0, n_chunks, chunk_body, 0, unroll=(n_chunks <= 8))

        # masked_fill + numerically-stable softmax over the sequence axis (all f32).
        u = jnp.where(mask_ref[...] != 0, _NEG_BIG, u_ref[...])
        m = jnp.max(u, axis=-1, keepdims=True)
        e = jnp.exp(u - m)
        denom = jnp.sum(e, axis=-1, keepdims=True)
        out_ref[...] = (e / denom).astype(out_ref.dtype)   # exact divide (tolerance)

    return kernel


def prepare_attention_params(w1, w2, vt, param_dtype=jnp.bfloat16):
    """Pre-transpose / cast the Linear weights ONCE (hoist out of the decode loop).

    w1, w2: [H, H] in PyTorch (out_features, in_features) layout; vt: [1, H]."""
    w1t = jnp.asarray(w1).T.astype(param_dtype)        # (in, out)
    w2t = jnp.asarray(w2).T.astype(param_dtype)
    vt_row = jnp.asarray(vt).reshape(1, -1).astype(param_dtype)
    return w1t, w2t, vt_row


def attention(decoder_state, encoder_outputs, mask, w1t, w2t, vt_row, *,
              batch_tile=128, vmem_budget_bytes=40 * 1024 * 1024, s_chunk_max=256):
    """decoder_state [B,H], encoder_outputs [B,S,H], mask [B,S] (nonzero == masked),
    (w1t, w2t, vt_row) from prepare_attention_params. Returns softmax scores [B,S] f32."""
    B, S, H = encoder_outputs.shape
    act_dtype = w1t.dtype                      # storage dtype for streamed tensors
    act_bytes = jnp.dtype(act_dtype).itemsize

    # --- sequence padding: only to the 16-row granule (NOT to 128) -------------
    granule = 16
    if S <= s_chunk_max:
        s_chunk = _round_up(S, granule)
        n_chunks = 1
    else:
        n_chunks = -(-S // s_chunk_max)
        s_chunk = _round_up(-(-S // n_chunks), granule)
    S_pad = s_chunk * n_chunks

    # --- batch tile: as large as the (v7x-safe) VMEM budget allows -------------
    def vmem_est(tb):
        H_l = _round_up(H, 128)                 # lane padding inside VMEM
        S_l = _round_up(S_pad, 128)
        enc_blk = tb * S_pad * H_l * act_bytes
        dec_blk = tb * H_l * act_bytes
        mask_blk = tb * S_l * 4
        out_blk = tb * S_l * 4
        w_blk = (2 * H * H_l + H_l) * act_bytes
        inter = 3 * tb * s_chunk * H_l * 4      # chunk working set (f32)
        u_scr = tb * S_l * 4
        return 2 * (enc_blk + dec_blk + mask_blk + out_blk + w_blk) + inter + u_scr

    TB = min(batch_tile, _round_up(B, 8))
    while TB > 8 and vmem_est(TB) > vmem_budget_bytes:
        TB = max(8, _round_up(TB // 2, 8))
    B_pad = _round_up(B, TB)
    vmem_limit = min(64 * 1024 * 1024, max(32 * 1024 * 1024, int(1.5 * vmem_est(TB))))

    # --- minimal padding / casting in HBM ---------------------------------------
    dec_p = decoder_state.astype(act_dtype)
    if B_pad != B:
        dec_p = jnp.zeros((B_pad, H), act_dtype).at[:B].set(dec_p)

    if (B_pad, S_pad) != (B, S) or encoder_outputs.dtype != act_dtype:
        enc_p = jnp.zeros((B_pad, S_pad, H), act_dtype).at[:B, :S].set(
            encoder_outputs.astype(act_dtype))
    else:
        enc_p = encoder_outputs

    mask_i = mask.astype(jnp.int32)
    if (B_pad, S_pad) != (B, S):
        mask_p = jnp.ones((B_pad, S_pad), jnp.int32).at[:B, :S].set(mask_i)
    else:
        mask_p = mask_i

    cost = pl.CostEstimate(
        flops=(2 * B_pad * S_pad * H * H        # W1 matmul
               + 2 * B_pad * H * H              # W2 matmul
               + 2 * B_pad * S_pad * H),        # vt multiply + reduce
        transcendentals=B_pad * S_pad * H + B_pad * S_pad,     # tanh + exp
        bytes_accessed=((B_pad * S_pad * H + B_pad * H + 2 * H * H + H) * act_bytes
                        + 2 * B_pad * S_pad * 4),
    )

    kernel = _make_attention_kernel(s_chunk, n_chunks)
    grid = (B_pad // TB,)

    out_p = pl.pallas_call(
        kernel,
        out_shape=jax.ShapeDtypeStruct((B_pad, S_pad), jnp.float32),
        grid_spec=pltpu.PrefetchScalarGridSpec(
            num_scalar_prefetch=0,
            grid=grid,
            in_specs=[
                pl.BlockSpec((TB, H), lambda i: (i, 0)),            # decoder_state
                pl.BlockSpec((TB, S_pad, H), lambda i: (i, 0, 0)),  # encoder_outputs
                pl.BlockSpec((TB, S_pad), lambda i: (i, 0)),        # mask
                pl.BlockSpec((H, H), lambda i: (0, 0)),             # W1^T (resident)
                pl.BlockSpec((H, H), lambda i: (0, 0)),             # W2^T (resident)
                pl.BlockSpec((1, H), lambda i: (0, 0)),             # vt   (resident)
            ],
            out_specs=pl.BlockSpec((TB, S_pad), lambda i: (i, 0)),
            scratch_shapes=[pltpu.VMEM((TB, S_pad), jnp.float32)],  # u accumulator
        ),
        compiler_params=pltpu.CompilerParams(
            dimension_semantics=("parallel",),
            vmem_limit_bytes=vmem_limit,
        ),
        cost_estimate=cost,
    )(dec_p, enc_p, mask_p, w1t, w2t, vt_row)

    return out_p[:B, :S]


def attention_ref(decoder_state, encoder_outputs, mask, w1, w2, vt):
    """Pure-JAX reference mirroring the PyTorch forward."""
    enc_t = jnp.einsum("bsh,oh->bso", encoder_outputs, w1)
    dec_t = decoder_state @ w2.T
    u = jnp.einsum("bsh,oh->bso", jnp.tanh(enc_t + dec_t[:, None, :]), vt)[..., 0]
    u = jnp.where(mask != 0, -jnp.inf, u)
    return jax.nn.softmax(u, axis=1)


if __name__ == "__main__":
    # Small, intentionally unaligned shapes; wrapper handles (8,128)-friendly tiling.
    B, S, H = 16, 10, 32

    key = jax.random.PRNGKey(0)
    k_dec, k_enc, k_w1, k_w2, k_vt, k_len = jax.random.split(key, 6)

    decoder_state = jax.random.normal(k_dec, (B, H), dtype=jnp.float32)
    encoder_outputs = jax.random.normal(k_enc, (B, S, H), dtype=jnp.float32)

    # mask: positions beyond each example's length are masked (nonzero == masked)
    lengths = jax.random.randint(k_len, (B,), 1, S + 1)
    mask = (jnp.arange(S)[None, :] >= lengths[:, None]).astype(jnp.int32)

    # deterministic "Linear" weights, PyTorch (out_features, in_features) layout
    bound = 1.0 / (H ** 0.5)
    w1 = jax.random.uniform(k_w1, (H, H), minval=-bound, maxval=bound, dtype=jnp.float32)
    w2 = jax.random.uniform(k_w2, (H, H), minval=-bound, maxval=bound, dtype=jnp.float32)
    vt = jax.random.uniform(k_vt, (1, H), minval=-bound, maxval=bound, dtype=jnp.float32)

    ref = attention_ref(decoder_state, encoder_outputs, mask, w1, w2, vt)

    # 1) f32 storage path: tighter tolerance vs the reference.
    p32 = prepare_attention_params(w1, w2, vt, param_dtype=jnp.float32)
    s32 = jax.block_until_ready(attention(decoder_state, encoder_outputs, mask, *p32))
    assert s32.shape == (B, S)
    assert jnp.allclose(s32, ref, atol=5e-3, rtol=5e-3), "f32 kernel mismatch vs reference"
    assert jnp.allclose(jnp.sum(s32, axis=1), 1.0, atol=1e-4), "softmax rows must sum to 1"
    assert bool(jnp.all(jnp.where(mask != 0, s32, 0.0) == 0.0))
    assert bool(jnp.all(jnp.isfinite(s32)))

    # 2) bf16 storage path (default; halves the dominant HBM enc stream): looser tol.
    pbf = prepare_attention_params(w1, w2, vt, param_dtype=jnp.bfloat16)
    sbf = jax.block_until_ready(attention(decoder_state, encoder_outputs, mask, *pbf))
    assert sbf.shape == (B, S)
    assert jnp.allclose(sbf, ref, atol=2e-2, rtol=2e-2), "bf16 kernel mismatch vs reference"
    assert bool(jnp.all(jnp.where(mask != 0, sbf, 0.0) == 0.0))
    assert bool(jnp.all(jnp.isfinite(sbf)))

    print("KERNEL_OK")
</pallas_src>

<mosaic_0001>
module attributes {stable_mosaic.version = 11 : i64} {
  func.func @kernel(%arg0: i32, %arg1: memref<16x32xf32, #tpu.memory_space<vmem>>, %arg2: memref<16x16x32xf32, #tpu.memory_space<vmem>>, %arg3: memref<16x16xi32, #tpu.memory_space<vmem>>, %arg4: memref<32x32xf32, #tpu.memory_space<vmem>>, %arg5: memref<32x32xf32, #tpu.memory_space<vmem>>, %arg6: memref<1x32xf32, #tpu.memory_space<vmem>>, %arg7: memref<16x16xf32, #tpu.memory_space<vmem>>, %arg8: memref<16x16xf32, #tpu.memory_space<vmem>>) attributes {dimension_semantics = [#tpu.dimension_semantics<parallel>], iteration_bounds = array<i64: 1>, scalar_prefetch = 0 : i64, scratch_operands = 1 : i64, tpu.core_type = #tpu.core_type<tc>, window_params = [{transform_indices = @transform_0, window_bounds = array<i64: 16, 32>}, {transform_indices = @transform_1, window_bounds = array<i64: 16, 16, 32>}, {transform_indices = @transform_2, window_bounds = array<i64: 16, 16>}, {pipeline_mode = #tpu.pipeline_mode<synchronous>, transform_indices = @transform_3, window_bounds = array<i64: 32, 32>}, {pipeline_mode = #tpu.pipeline_mode<synchronous>, transform_indices = @transform_4, window_bounds = array<i64: 32, 32>}, {pipeline_mode = #tpu.pipeline_mode<synchronous>, transform_indices = @transform_5, window_bounds = array<i64: 1, 32>}, {transform_indices = @transform_6, window_bounds = array<i64: 16, 16>}]} {
    %c0 = arith.constant 0 : index
    %c0_0 = arith.constant 0 : index
    %0 = vector.load %arg4[%c0, %c0_0] : memref<32x32xf32, #tpu.memory_space<vmem>>, vector<32x32xf32>
    %c0_1 = arith.constant 0 : index
    %c0_2 = arith.constant 0 : index
    %1 = vector.load %arg6[%c0_1, %c0_2] : memref<1x32xf32, #tpu.memory_space<vmem>>, vector<1x32xf32>
    %2 = vector.shape_cast %1 : vector<1x32xf32> to vector<1x1x32xf32>
    %c0_3 = arith.constant 0 : index
    %c0_4 = arith.constant 0 : index
    %3 = vector.load %arg1[%c0_3, %c0_4] : memref<16x32xf32, #tpu.memory_space<vmem>>, vector<16x32xf32>
    %c0_5 = arith.constant 0 : index
    %c0_6 = arith.constant 0 : index
    %4 = vector.load %arg5[%c0_5, %c0_6] : memref<32x32xf32, #tpu.memory_space<vmem>>, vector<32x32xf32>
    %cst = arith.constant dense<0.000000e+00> : vector<16x32xf32>
    %5 = tpu.matmul %3, %4, %cst {dimension_numbers = #tpu.dot_dimension_numbers<[1], [0], [0], [1], [0, 0, 1, 1], [], []>} : vector<16x32xf32>, vector<32x32xf32>, vector<16x32xf32> -> vector<16x32xf32>
    %6 = vector.shape_cast %5 : vector<16x32xf32> to vector<16x1x32xf32>
    %c0_7 = arith.constant 0 : index
    %c0_8 = arith.constant 0 : index
    %c0_9 = arith.constant 0 : index
    %7 = vector.load %arg2[%c0_7, %c0_8, %c0_9] : memref<16x16x32xf32, #tpu.memory_space<vmem>>, vector<16x16x32xf32>
    %8 = vector.shape_cast %7 : vector<16x16x32xf32> to vector<256x32xf32>
    %cst_10 = arith.constant dense<0.000000e+00> : vector<256x32xf32>
    %9 = tpu.matmul %8, %0, %cst_10 {dimension_numbers = #tpu.dot_dimension_numbers<[1], [0], [0], [1], [0, 0, 1, 1], [], []>} : vector<256x32xf32>, vector<32x32xf32>, vector<256x32xf32> -> vector<256x32xf32>
    %10 = vector.shape_cast %9 : vector<256x32xf32> to vector<16x16x32xf32>
    %11 = vector.broadcast %6 : vector<16x1x32xf32> to vector<16x16x32xf32>
    %12 = arith.addf %10, %11 : vector<16x16x32xf32>
    %13 = math.tanh %12 : vector<16x16x32xf32>
    %14 = vector.broadcast %2 : vector<1x1x32xf32> to vector<16x16x32xf32>
    %15 = arith.mulf %13, %14 : vector<16x16x32xf32>
    %cst_11 = arith.constant dense<0.000000e+00> : vector<16x16xf32>
    %16 = vector.multi_reduction <add>, %15, %cst_11 [2] : vector<16x16x32xf32> to vector<16x16xf32>
    %c0_12 = arith.constant 0 : index
    %c0_13 = arith.constant 0 : index
    %17 = vector.load %arg8[%c0_12, %c0_13] : memref<16x16xf32, #tpu.memory_space<vmem>>, vector<16x16xf32>
    tpu.vector_store %arg8[%c0_12, %c0_13], %16 {strides = array<i32>} : memref<16x16xf32, #tpu.memory_space<vmem>>, vector<16x16xf32>,
    %c0_14 = arith.constant 0 : index
    %c0_15 = arith.constant 0 : index
    %18 = vector.load %arg3[%c0_14, %c0_15] : memref<16x16xi32, #tpu.memory_space<vmem>>, vector<16x16xi32>
    %c0_i32 = arith.constant 0 : i32
    %19 = vector.broadcast %c0_i32 : i32 to vector<16x16xi32>
    %20 = arith.cmpi ne, %18, %19 : vector<16x16xi32>
    %c0_16 = arith.constant 0 : index
    %c0_17 = arith.constant 0 : index
    %21 = vector.load %arg8[%c0_16, %c0_17] : memref<16x16xf32, #tpu.memory_space<vmem>>, vector<16x16xf32>
    %cst_18 = arith.constant -1.000000e+30 : f32
    %22 = vector.broadcast %cst_18 : f32 to vector<16x16xf32>
    %23 = arith.select %20, %22, %21 : vector<16x16xi1>, vector<16x16xf32>
    %cst_19 = arith.constant dense<0xFF800000> : vector<16xf32>
    %24 = vector.multi_reduction <maximumf>, %23, %cst_19 [1] : vector<16x16xf32> to vector<16xf32>
    %25 = vector.shape_cast %24 : vector<16xf32> to vector<16x1xf32>
    %26 = vector.broadcast %25 : vector<16x1xf32> to vector<16x16xf32>
    %27 = arith.subf %23, %26 : vector<16x16xf32>
    %28 = math.exp %27 : vector<16x16xf32>
    %cst_20 = arith.constant dense<0.000000e+00> : vector<16xf32>
    %29 = vector.multi_reduction <add>, %28, %cst_20 [1] : vector<16x16xf32> to vector<16xf32>
    %30 = vector.shape_cast %29 : vector<16xf32> to vector<16x1xf32>
    %31 = vector.broadcast %30 : vector<16x1xf32> to vector<16x16xf32>
    %32 = arith.divf %28, %31 : vector<16x16xf32>
    %c0_21 = arith.constant 0 : index
    %c0_22 = arith.constant 0 : index
    %33 = vector.load %arg7[%c0_21, %c0_22] : memref<16x16xf32, #tpu.memory_space<vmem>>, vector<16x16xf32>
    tpu.vector_store %arg7[%c0_21, %c0_22], %32 {strides = array<i32>} : memref<16x16xf32, #tpu.memory_space<vmem>>, vector<16x16xf32>,
    return
  }
  func.func @transform_0(%arg0: i32) -> (i32, i32) {
    %c0_i32 = arith.constant 0 : i32
    %c0_i32_0 = arith.constant 0 : i32
    return %arg0, %c0_i32 : i32, i32
  }
  func.func @transform_1(%arg0: i32) -> (i32, i32, i32) {
    %c0_i32 = arith.constant 0 : i32
    %c0_i32_0 = arith.constant 0 : i32
    %c0_i32_1 = arith.constant 0 : i32
    return %arg0, %c0_i32, %c0_i32_0 : i32, i32, i32
  }
  func.func @transform_2(%arg0: i32) -> (i32, i32) {
    %c0_i32 = arith.constant 0 : i32
    %c0_i32_0 = arith.constant 0 : i32
    return %arg0, %c0_i32 : i32, i32
  }
  func.func @transform_3(%arg0: i32) -> (i32, i32) {
    %c0_i32 = arith.constant 0 : i32
    %c0_i32_0 = arith.constant 0 : i32
    %c0_i32_1 = arith.constant 0 : i32
    return %c0_i32, %c0_i32_0 : i32, i32
  }
  func.func @transform_4(%arg0: i32) -> (i32, i32) {
    %c0_i32 = arith.constant 0 : i32
    %c0_i32_0 = arith.constant 0 : i32
    %c0_i32_1 = arith.constant 0 : i32
    return %c0_i32, %c0_i32_0 : i32, i32
  }
  func.func @transform_5(%arg0: i32) -> (i32, i32) {
    %c0_i32 = arith.constant 0 : i32
    %c0_i32_0 = arith.constant 0 : i32
    %c0_i32_1 = arith.constant 0 : i32
    return %c0_i32, %c0_i32_0 : i32, i32
  }
  func.func @transform_6(%arg0: i32) -> (i32, i32) {
    %c0_i32 = arith.constant 0 : i32
    %c0_i32_0 = arith.constant 0 : i32
    return %arg0, %c0_i32 : i32, i32
  }
}

</mosaic_0001>

<llo_original>
// kernel: tpu_custom_call.1
$region0: #{tpu_custom_call.1}
  #allocation0 [shape = 'u32[]', space=smem, size = 0x4, offset = 0x4, fixed_abs, tag = 'smem constant byte address 0x4 - core index']
  #allocation1 [shape = 'u32[144,128]{1,0:T(1,128)}', space=vmem, size = 0x12000, scoped, tag = 'internal scratch']
  #allocation2 [shape = 'f32[16,16]{1,0:T(8,128)}', space=vmem, size = 0x2000, scoped, tag = 'scratch operand']
  %s0 = inlined_call_operand.hbm [shape: f32[16,32], index: 0, kind: input, shape index: {}]
  %s1 = inlined_call_operand.hbm [shape: f32[16,16,32], index: 1, kind: input, shape index: {}]
  %s2 = inlined_call_operand.hbm [shape: s32[16,16], index: 2, kind: input, shape index: {}]
  %s3 = inlined_call_operand.hbm [shape: f32[32,32], index: 3, kind: input, shape index: {}]
  %s4 = inlined_call_operand.hbm [shape: f32[32,32], index: 4, kind: input, shape index: {}]
  %s5 = inlined_call_operand.vmem [shape: f32[1,32], index: 5, kind: input, shape index: {}]
  %s6 = inlined_call_operand.hbm [shape: f32[16,16], index: 6, kind: output, shape index: {}]
  %s7 = sld [smem:[#allocation0]]
  $region54: #{tpu_custom_call.1} parent=0
    _
  %s9 = ssub.s32 1, %s7
  %s10 = scalar_select 0, %s9, %s7
  $region1: #{tpu_custom_call.1} parent=0
    #allocation3 [shape = 'u8[8192]{0}', space=vmem, size = 0x2000, scoped, tag = 'input window, operand 0, single buffered']
    #allocation4 [shape = 's32[1]{0}', space=sflag, size = 0x4, scoped, tag = 'scoped memory for tpu_custom_call.1']
    #allocation5 [shape = 's32[1]{0}', space=sflag, size = 0x4, scoped, tag = 'scoped memory for tpu_custom_call.1']
    #allocation6 [shape = 'u8[131072]{0}', space=vmem, size = 0x20000, scoped, tag = 'input window, operand 1, single buffered']
    #allocation7 [shape = 's32[1]{0}', space=sflag, size = 0x4, scoped, tag = 'scoped memory for tpu_custom_call.1']
    #allocation8 [shape = 'u8[8192]{0}', space=vmem, size = 0x2000, scoped, tag = 'input window, operand 2, single buffered']
    #allocation9 [shape = 'u8[16384]{0}', space=vmem, size = 0x4000, scoped, tag = 'input window, operand 3, single buffered']
    #allocation10 [shape = 's32[1]{0}', space=sflag, size = 0x4, scoped, tag = 'scoped memory for tpu_custom_call.1']
    #allocation11 [shape = 'u8[16384]{0}', space=vmem, size = 0x4000, scoped, tag = 'input window, operand 4, single buffered']
    #allocation12 [shape = 'u8[8192]{0}', space=vmem, size = 0x2000, scoped, tag = 'output window, operand 0, single buffered']
    %11 = vsyncpa [#allocation4], 0
    %12 = vsyncpa [#allocation7], 0
    %13 = vsyncpa [#allocation10], 0
    %14 = vsyncpa [#allocation5], 0
    // Predicated region
    $region2: #{tpu_custom_call.1} parent=1 // pred_check
      _
    $region3: #{tpu_custom_call.1} parent=1 // pred_check_branch
      %16 = sbr.rel (0) target = $region5
    $region4: #{tpu_custom_call.1} parent=1 // pred_region
      %s18 = ssub.s32 256, 256
      %19 = vsyncadd [#allocation4], %s18
      %s20 = sshll.u32 [#allocation3], 4
      %s21 = int_to_ptr.vmem [resolvable:$true] %s20
      %26 = dma.hbm_to_vmem [thread:$0]  %s0, 256, %s21, [#allocation4], 128, 128, 8
    $region5: #{tpu_custom_call.1} parent=1 // pred_fallthru
      _
    // Predicated region
    $region6: #{tpu_custom_call.1} parent=1 // pred_check
      _
    $region7: #{tpu_custom_call.1} parent=1 // pred_check_branch
      %28 = sbr.rel (0) target = $region9
    $region8: #{tpu_custom_call.1} parent=1 // pred_region
      %s30 = ssub.s32 4096, 4096
      %31 = vsyncadd [#allocation7], %s30
      %s32 = sshll.u32 [#allocation6], 4
      %s33 = int_to_ptr.vmem [resolvable:$true] %s32
      %38 = dma.hbm_to_vmem [thread:$0]  %s1, 4096, %s33, [#allocation7], 128, 128, 8
    $region9: #{tpu_custom_call.1} parent=1 // pred_fallthru
      _
    // Predicated region
    $region10: #{tpu_custom_call.1} parent=1 // pred_check
      _
    $region11: #{tpu_custom_call.1} parent=1 // pred_check_branch
      %40 = sbr.rel (0) target = $region13
    $region12: #{tpu_custom_call.1} parent=1 // pred_region
      %s42 = ssub.s32 256, 256
      %43 = vsyncadd [#allocation7], %s42
      %s44 = sshll.u32 [#allocation8], 4
      %s45 = int_to_ptr.vmem [resolvable:$true] %s44
      %50 = dma.hbm_to_vmem [thread:$0]  %s2, 256, %s45, [#allocation7], 128, 128, 8
    $region13: #{tpu_custom_call.1} parent=1 // pred_fallthru
      _
    // Predicated region
    $region14: #{tpu_custom_call.1} parent=1 // pred_check
      _
    $region15: #{tpu_custom_call.1} parent=1 // pred_check_branch
      %52 = sbr.rel (0) target = $region17
    $region16: #{tpu_custom_call.1} parent=1 // pred_region
      %s54 = ssub.s32 512, 512
      %55 = vsyncadd [#allocation10], %s54
      %s56 = sshll.u32 [#allocation9], 4
      %s57 = int_to_ptr.vmem [resolvable:$true] %s56
      %62 = dma.hbm_to_vmem [thread:$0]  %s3, 512, %s57, [#allocation10], 128, 128, 8
    $region17: #{tpu_custom_call.1} parent=1 // pred_fallthru
      _
    // Predicated region
    $region18: #{tpu_custom_call.1} parent=1 // pred_check
      _
    $region19: #{tpu_custom_call.1} parent=1 // pred_check_branch
      %64 = sbr.rel (0) target = $region21
    $region20: #{tpu_custom_call.1} parent=1 // pred_region
      %s66 = ssub.s32 512, 512
      %67 = vsyncadd [#allocation10], %s66
      %s68 = sshll.u32 [#allocation11], 4
      %s69 = int_to_ptr.vmem [resolvable:$true] %s68
      %74 = dma.hbm_to_vmem [thread:$0]  %s4, 512, %s69, [#allocation10], 128, 128, 8
    $region21: #{tpu_custom_call.1} parent=1 // pred_fallthru
      _
    // Predicated region
    $region22: #{tpu_custom_call.1} parent=1 // pred_check
      _
    $region23: #{tpu_custom_call.1} parent=1 // pred_check_branch
      %76 = sbr.rel (0) target = $region25
    $region24: #{tpu_custom_call.1} parent=1 // pred_region
      _
    $region25: #{tpu_custom_call.1} parent=1 // pred_fallthru
      _
    // Predicated region
    $region26: #{tpu_custom_call.1} parent=1 // pred_check
      _
    $region27: #{tpu_custom_call.1} parent=1 // pred_check_branch
      %78 = sbr.rel (0) target = $region29
    $region28: #{tpu_custom_call.1} parent=1 // pred_region
      %79 = dma.done [#allocation4], 256
    $region29: #{tpu_custom_call.1} parent=1 // pred_fallthru
      _
    // Predicated region
    $region30: #{tpu_custom_call.1} parent=1 // pred_check
      _
    $region31: #{tpu_custom_call.1} parent=1 // pred_check_branch
      %81 = sbr.rel (0) target = $region33
    $region32: #{tpu_custom_call.1} parent=1 // pred_region
      %82 = dma.done [#allocation7], 4096
    $region33: #{tpu_custom_call.1} parent=1 // pred_fallthru
      _
    // Predicated region
    $region34: #{tpu_custom_call.1} parent=1 // pred_check
      _
    $region35: #{tpu_custom_call.1} parent=1 // pred_check_branch
      %84 = sbr.rel (0) target = $region37
    $region36: #{tpu_custom_call.1} parent=1 // pred_region
      %85 = dma.done [#allocation7], 256
    $region37: #{tpu_custom_call.1} parent=1 // pred_fallthru
      _
    // Predicated region
    $region38: #{tpu_custom_call.1} parent=1 // pred_check
      _
    $region39: #{tpu_custom_call.1} parent=1 // pred_check_branch
      %87 = sbr.rel (0) target = $region41
    $region40: #{tpu_custom_call.1} parent=1 // pred_region
      %88 = dma.done [#allocation10], 512
    $region41: #{tpu_custom_call.1} parent=1 // pred_fallthru
      _
    // Predicated region
    $region42: #{tpu_custom_call.1} parent=1 // pred_check
      _
    $region43: #{tpu_custom_call.1} parent=1 // pred_check_branch
      %90 = sbr.rel (0) target = $region45
    $region44: #{tpu_custom_call.1} parent=1 // pred_region
      %91 = dma.done [#allocation10], 512
    $region45: #{tpu_custom_call.1} parent=1 // pred_fallthru
      _
    %v92 = vld [vmem:[#allocation9] sm:$0xff]
    %v93 = vld [vmem:[#allocation9 + $0x8] sm:$0xff]
    %v94 = vld [vmem:[#allocation9 + $0x10] sm:$0xff]
    %v95 = vld [vmem:[#allocation9 + $0x18] sm:$0xff]
    %v96 = vld [vmem:[%s5] sm:$0x1]
    %v97 = vld [vmem:[#allocation3] sm:$0xff]
    %v98 = vld [vmem:[#allocation3 + $0x8] sm:$0xff]
    %v99 = vld [vmem:[#allocation11] sm:$0xff]
    %v100 = vld [vmem:[#allocation11 + $0x8] sm:$0xff]
    %v101 = vld [vmem:[#allocation11 + $0x10] sm:$0xff]
    %v102 = vld [vmem:[#allocation11 + $0x18] sm:$0xff]
    %vm103 = vcmask 261120
    %v105 = vsel %vm103, %v97, 0
    %v108 = vsel %vm103, %v98, 0
    %110 = vmatprep.subr.mxu0 0.0
    %111 = vmatpush1.msra.mxu0 %v99
    %112 = vmatprep.subr.mxu0 0.0
    %113 = vmatpush1.msra.mxu0 %v100
    %114 = vmatprep.subr.mxu0 0.0
    %115 = vmatpush1.msra.mxu0 %v101
    %116 = vmatprep.subr.mxu0 0.0
    %117 = vmatpush1.msra.mxu0 %v102
    %118 = vmatprep.subr.mxu0 0.0
    %119 = vmatpush1.msra.mxu0 0.0
    %120 = vmatprep.subr.mxu0 0.0
    %121 = vmatpush1.msra.mxu0 0.0
    %122 = vmatprep.subr.mxu0 0.0
    %123 = vmatpush1.msra.mxu0 0.0
    %124 = vmatprep.subr.mxu0 0.0
    %125 = vmatpush1.msra.mxu0 0.0
    %126 = vmatprep.subr.mxu0 0.0
    %127 = vmatpush1.msra.mxu0 0.0
    %128 = vmatprep.subr.mxu0 0.0
    %129 = vmatpush1.msra.mxu0 0.0
    %130 = vmatprep.subr.mxu0 0.0
    %131 = vmatpush1.msra.mxu0 0.0
    %132 = vmatprep.subr.mxu0 0.0
    %133 = vmatpush1.msra.mxu0 0.0
    %134 = vmatprep.subr.mxu0 0.0
    %135 = vmatpush1.msra.mxu0 0.0
    %136 = vmatprep.subr.mxu0 0.0
    %137 = vmatpush1.msra.mxu0 0.0
    %138 = vmatprep.subr.mxu0 0.0
    %139 = vmatpush1.msra.mxu0 0.0
    %140 = vmatprep.subr.mxu0 0.0
    %141 = vmatpush1.msra.mxu0 0.0
    %142 = vmatprep.subr.mxu0 0.0
    %143 = vmatpush1.msra.mxu0 0.0
    %144 = vmatprep.subr.mxu0 0.0
    %145 = vmatpush1.msra.mxu0 0.0
    %146 = vmatprep.subr.mxu0 0.0
    %147 = vmatpush1.msra.mxu0 0.0
    %148 = vmatprep.subr.mxu0 0.0
    %149 = vmatpush1.msra.mxu0 0.0
    %150 = vmatprep.subr.mxu0 0.0
    %151 = vmatpush1.msra.mxu0 0.0
    %152 = vmatprep.subr.mxu0 0.0
    %153 = vmatpush1.msra.mxu0 0.0
    %154 = vmatprep.subr.mxu0 0.0
    %155 = vmatpush1.msra.mxu0 0.0
    %156 = vmatprep.subr.mxu0 0.0
    %157 = vmatpush1.msra.mxu0 0.0
    %158 = vmatprep.subr.mxu0 0.0
    %159 = vmatpush1.msra.mxu0 0.0
    %160 = vmatprep.subr.mxu0 0.0
    %161 = vmatpush1.msra.mxu0 0.0
    %162 = vmatprep.subr.mxu0 0.0
    %163 = vmatpush1.msra.mxu0 0.0
    %164 = vmatprep.subr.mxu0 0.0
    %165 = vmatpush1.msra.mxu0 0.0
    %166 = vmatprep.subr.mxu0 0.0
    %167 = vmatpush1.msra.mxu0 0.0
    %168 = vmatprep.subr.mxu0 0.0
    %169 = vmatpush1.msra.mxu0 0.0
    %170 = vmatprep.subr.mxu0 0.0
    %171 = vmatpush1.msra.mxu0 0.0
    %172 = vmatprep.subr.mxu0 0.0
    %173 = vmatpush1.msra.mxu0 0.0
    %174 = vmatprep.mubr.f32.mxu0 0.0
    %175 = vmatmul.mubr.f32.gmra.mrb[0].mxu0 %v105
    %v176 = vpop.f32.mrb[0].mxu0
    %v177 = vadd.f32 0.0, %v176
    %v178 = vpop.f32.mrb[0].mxu0
    %179 = vmatprep.mubr.f32.mxu0 0.0
    %180 = vmatmul.mubr.f32.gmra.mrb[0].mxu0 %v108
    %v181 = vpop.f32.mrb[0].mxu0
    %v182 = vadd.f32 0.0, %v181
    %v183 = vpop.f32.mrb[0].mxu0
    %184 = vdwg.mxu0
    %v187 = vcombine.high %v177, %v177
    %v189 = vunpack.c.l.s4 1966171168
    %v190 = vunpack.c.0.s8 %v189
    %v191 = vlaneseq
    %v192 = vshrl.u32 %v191, 7
    %v193 = vsub.s32 %v190, %v192
    %v194 = vrot.slane %v177, %v193
    %v196 = vunpack.c.l.s4 1966171168
    %v197 = vunpack.c.0.s8 %v196
    %v198 = vlaneseq
    %v199 = vshrl.u32 %v198, 7
    %v200 = vsub.s32 %v197, %v199
    %v201 = vrot.slane %v187, %v200
    %v202 = vcombine.high %v194, %v194
    %v203 = vcombine.high %v201, %v201
    %v205 = vunpack.c.l.s4 1966171168
    %v206 = vunpack.c.0.s8 %v205
    %v207 = vlaneseq
    %v208 = vshrl.u32 %v207, 7
    %v209 = vsub.s32 %v206, %v208
    %v210 = vrot.slane %v194, %v209
    %v212 = vunpack.c.l.s4 1966171168
    %v213 = vunpack.c.0.s8 %v212
    %v214 = vlaneseq
    %v215 = vshrl.u32 %v214, 7
    %v216 = vsub.s32 %v213, %v215
    %v217 = vrot.slane %v201, %v216
    %v219 = vunpack.c.l.s4 1966171168
    %v220 = vunpack.c.0.s8 %v219
    %v221 = vlaneseq
    %v222 = vshrl.u32 %v221, 7
    %v223 = vsub.s32 %v220, %v222
    %v224 = vrot.slane %v202, %v223
    %v226 = vunpack.c.l.s4 1966171168
    %v227 = vunpack.c.0.s8 %v226
    %v228 = vlaneseq
    %v229 = vshrl.u32 %v228, 7
    %v230 = vsub.s32 %v227, %v229
    %v231 = vrot.slane %v203, %v230
    %v232 = vcombine.high %v210, %v210
    %v233 = vcombine.high %v217, %v217
    %v234 = vcombine.high %v224, %v224
    %v235 = vcombine.high %v231, %v231
    %v236 = vcombine.high %v182, %v182
    %v238 = vunpack.c.l.s4 1966171168
    %v239 = vunpack.c.0.s8 %v238
    %v240 = vlaneseq
    %v241 = vshrl.u32 %v240, 7
    %v242 = vsub.s32 %v239, %v241
    %v243 = vrot.slane %v182, %v242
    %v245 = vunpack.c.l.s4 1966171168
    %v246 = vunpack.c.0.s8 %v245
    %v247 = vlaneseq
    %v248 = vshrl.u32 %v247, 7
    %v249 = vsub.s32 %v246, %v248
    %v250 = vrot.slane %v236, %v249
    %v251 = vcombine.high %v243, %v243
    %v252 = vcombine.high %v250, %v250
    %v254 = vunpack.c.l.s4 1966171168
    %v255 = vunpack.c.0.s8 %v254
    %v256 = vlaneseq
    %v257 = vshrl.u32 %v256, 7
    %v258 = vsub.s32 %v255, %v257
    %v259 = vrot.slane %v243, %v258
    %v261 = vunpack.c.l.s4 1966171168
    %v262 = vunpack.c.0.s8 %v261
    %v263 = vlaneseq
    %v264 = vshrl.u32 %v263, 7
    %v265 = vsub.s32 %v262, %v264
    %v266 = vrot.slane %v250, %v265
    %v268 = vunpack.c.l.s4 1966171168
    %v269 = vunpack.c.0.s8 %v268
    %v270 = vlaneseq
    %v271 = vshrl.u32 %v270, 7
    %v272 = vsub.s32 %v269, %v271
    %v273 = vrot.slane %v251, %v272
    %v275 = vunpack.c.l.s4 1966171168
    %v276 = vunpack.c.0.s8 %v275
    %v277 = vlaneseq
    %v278 = vshrl.u32 %v277, 7
    %v279 = vsub.s32 %v276, %v278
    %v280 = vrot.slane %v252, %v279
    %v281 = vcombine.high %v259, %v259
    %v282 = vcombine.high %v266, %v266
    %v283 = vcombine.high %v273, %v273
    %v284 = vcombine.high %v280, %v280
    %v285 = vld [vmem:[#allocation6] sm:$0xff]
    %v286 = vld [vmem:[#allocation6 + $0x8] sm:$0xff]
    %v287 = vld [vmem:[#allocation6 + $0x10] sm:$0xff]
    %v288 = vld [vmem:[#allocation6 + $0x18] sm:$0xff]
    %v289 = vld [vmem:[#allocation6 + $0x20] sm:$0xff]
    %v290 = vld [vmem:[#allocation6 + $0x28] sm:$0xff]
    %v291 = vld [vmem:[#allocation6 + $0x30] sm:$0xff]
    %v292 = vld [vmem:[#allocation6 + $0x38] sm:$0xff]
    %v293 = vld [vmem:[#allocation6 + $0x40] sm:$0xff]
    %v294 = vld [vmem:[#allocation6 + $0x48] sm:$0xff]
    %v295 = vld [vmem:[#allocation6 + $0x50] sm:$0xff]
    %v296 = vld [vmem:[#allocation6 + $0x58] sm:$0xff]
    %v297 = vld [vmem:[#allocation6 + $0x60] sm:$0xff]
    %v298 = vld [vmem:[#allocation6 + $0x68] sm:$0xff]
    %v299 = vld [vmem:[#allocation6 + $0x70] sm:$0xff]
    %v300 = vld [vmem:[#allocation6 + $0x78] sm:$0xff]
    %v301 = vld [vmem:[#allocation6 + $0x80] sm:$0xff]
    %v302 = vld [vmem:[#allocation6 + $0x88] sm:$0xff]
    %v303 = vld [vmem:[#allocation6 + $0x90] sm:$0xff]
    %v304 = vld [vmem:[#allocation6 + $0x98] sm:$0xff]
    %v305 = vld [vmem:[#allocation6 + $0xa0] sm:$0xff]
    %v306 = vld [vmem:[#allocation6 + $0xa8] sm:$0xff]
    %v307 = vld [vmem:[#allocation6 + $0xb0] sm:$0xff]
    %v308 = vld [vmem:[#allocation6 + $0xb8] sm:$0xff]
    %v309 = vld [vmem:[#allocation6 + $0xc0] sm:$0xff]
    %v310 = vld [vmem:[#allocation6 + $0xc8] sm:$0xff]
    %v311 = vld [vmem:[#allocation6 + $0xd0] sm:$0xff]
    %v312 = vld [vmem:[#allocation6 + $0xd8] sm:$0xff]
    %v313 = vld [vmem:[#allocation6 + $0xe0] sm:$0xff]
    %v314 = vld [vmem:[#allocation6 + $0xe8] sm:$0xff]
    %v315 = vld [vmem:[#allocation6 + $0xf0] sm:$0xff]
    %v316 = vld [vmem:[#allocation6 + $0xf8] sm:$0xff]
    %v318 = vsel %vm103, %v285, 0
    %v321 = vsel %vm103, %v286, 0
    %v324 = vsel %vm103, %v287, 0
    %v327 = vsel %vm103, %v288, 0
    %v330 = vsel %vm103, %v289, 0
    %v333 = vsel %vm103, %v290, 0
    %v336 = vsel %vm103, %v291, 0
    %v339 = vsel %vm103, %v292, 0
    %v342 = vsel %vm103, %v293, 0
    %v345 = vsel %vm103, %v294, 0
    %v348 = vsel %vm103, %v295, 0
    %v351 = vsel %vm103, %v296, 0
    %v354 = vsel %vm103, %v297, 0
    %v357 = vsel %vm103, %v298, 0
    %v360 = vsel %vm103, %v299, 0
    %v363 = vsel %vm103, %v300, 0
    %v366 = vsel %vm103, %v301, 0
    %v369 = vsel %vm103, %v302, 0
    %v372 = vsel %vm103, %v303, 0
    %v375 = vsel %vm103, %v304, 0
    %v378 = vsel %vm103, %v305, 0
    %v381 = vsel %vm103, %v306, 0
    %v384 = vsel %vm103, %v307, 0
    %v387 = vsel %vm103, %v308, 0
    %v390 = vsel %vm103, %v309, 0
    %v393 = vsel %vm103, %v310, 0
    %v396 = vsel %vm103, %v311, 0
    %v399 = vsel %vm103, %v312, 0
    %v402 = vsel %vm103, %v313, 0
    %v405 = vsel %vm103, %v314, 0
    %v408 = vsel %vm103, %v315, 0
    %v411 = vsel %vm103, %v316, 0
    %413 = vmatprep.subr.mxu0 0.0
    %414 = vmatpush1.msra.mxu0 %v92
    %415 = vmatprep.subr.mxu0 0.0
    %416 = vmatpush1.msra.mxu0 %v93
    %417 = vmatprep.subr.mxu0 0.0
    %418 = vmatpush1.msra.mxu0 %v94
    %419 = vmatprep.subr.mxu0 0.0
    %420 = vmatpush1.msra.mxu0 %v95
    %421 = vmatprep.subr.mxu0 0.0
    %422 = vmatpush1.msra.mxu0 0.0
    %423 = vmatprep.subr.mxu0 0.0
    %424 = vmatpush1.msra.mxu0 0.0
    %425 = vmatprep.subr.mxu0 0.0
    %426 = vmatpush1.msra.mxu0 0.0
    %427 = vmatprep.subr.mxu0 0.0
    %428 = vmatpush1.msra.mxu0 0.0
    %429 = vmatprep.subr.mxu0 0.0
    %430 = vmatpush1.msra.mxu0 0.0
    %431 = vmatprep.subr.mxu0 0.0
    %432 = vmatpush1.msra.mxu0 0.0
    %433 = vmatprep.subr.mxu0 0.0
    %434 = vmatpush1.msra.mxu0 0.0
    %435 = vmatprep.subr.mxu0 0.0
    %436 = vmatpush1.msra.mxu0 0.0
    %437 = vmatprep.subr.mxu0 0.0
    %438 = vmatpush1.msra.mxu0 0.0
    %439 = vmatprep.subr.mxu0 0.0
    %440 = vmatpush1.msra.mxu0 0.0
    %441 = vmatprep.subr.mxu0 0.0
    %442 = vmatpush1.msra.mxu0 0.0
    %443 = vmatprep.subr.mxu0 0.0
    %444 = vmatpush1.msra.mxu0 0.0
    %445 = vmatprep.subr.mxu0 0.0
    %446 = vmatpush1.msra.mxu0 0.0
    %447 = vmatprep.subr.mxu0 0.0
    %448 = vmatpush1.msra.mxu0 0.0
    %449 = vmatprep.subr.mxu0 0.0
    %450 = vmatpush1.msra.mxu0 0.0
    %451 = vmatprep.subr.mxu0 0.0
    %452 = vmatpush1.msra.mxu0 0.0
    %453 = vmatprep.subr.mxu0 0.0
    %454 = vmatpush1.msra.mxu0 0.0
    %455 = vmatprep.subr.mxu0 0.0
    %456 = vmatpush1.msra.mxu0 0.0
    %457 = vmatprep.subr.mxu0 0.0
    %458 = vmatpush1.msra.mxu0 0.0
    %459 = vmatprep.subr.mxu0 0.0
    %460 = vmatpush1.msra.mxu0 0.0
    %461 = vmatprep.subr.mxu0 0.0
    %462 = vmatpush1.msra.mxu0 0.0
    %463 = vmatprep.subr.mxu0 0.0
    %464 = vmatpush1.msra.mxu0 0.0
    %465 = vmatprep.subr.mxu0 0.0
    %466 = vmatpush1.msra.mxu0 0.0
    %467 = vmatprep.subr.mxu0 0.0
    %468 = vmatpush1.msra.mxu0 0.0
    %469 = vmatprep.subr.mxu0 0.0
    %470 = vmatpush1.msra.mxu0 0.0
    %471 = vmatprep.subr.mxu0 0.0
    %472 = vmatpush1.msra.mxu0 0.0
    %473 = vmatprep.subr.mxu0 0.0
    %474 = vmatpush1.msra.mxu0 0.0
    %475 = vmatprep.subr.mxu0 0.0
    %476 = vmatpush1.msra.mxu0 0.0
    %477 = vmatprep.mubr.f32.mxu0 0.0
    %478 = vmatmul.mubr.f32.gmra.mrb[0].mxu0 %v318
    %v479 = vpop.f32.mrb[0].mxu0
    %v480 = vadd.f32 0.0, %v479
    %v481 = vpop.f32.mrb[0].mxu0
    %482 = vmatprep.mubr.f32.mxu0 0.0
    %483 = vmatmul.mubr.f32.gmra.mrb[0].mxu0 %v321
    %v484 = vpop.f32.mrb[0].mxu0
    %v485 = vadd.f32 0.0, %v484
    %v486 = vpop.f32.mrb[0].mxu0
    %487 = vmatprep.mubr.f32.mxu0 0.0
    %488 = vmatmul.mubr.f32.gmra.mrb[0].mxu0 %v324
    %v489 = vpop.f32.mrb[0].mxu0
    %v490 = vadd.f32 0.0, %v489
    %v491 = vpop.f32.mrb[0].mxu0
    %492 = vmatprep.mubr.f32.mxu0 0.0
    %493 = vmatmul.mubr.f32.gmra.mrb[0].mxu0 %v327
    %v494 = vpop.f32.mrb[0].mxu0
    %v495 = vadd.f32 0.0, %v494
    %v496 = vpop.f32.mrb[0].mxu0
    %497 = vmatprep.mubr.f32.mxu0 0.0
    %498 = vmatmul.mubr.f32.gmra.mrb[0].mxu0 %v330
    %v499 = vpop.f32.mrb[0].mxu0
    %v500 = vadd.f32 0.0, %v499
    %v501 = vpop.f32.mrb[0].mxu0
    %502 = vmatprep.mubr.f32.mxu0 0.0
    %503 = vmatmul.mubr.f32.gmra.mrb[0].mxu0 %v333
    %v504 = vpop.f32.mrb[0].mxu0
    %v505 = vadd.f32 0.0, %v504
    %v506 = vpop.f32.mrb[0].mxu0
    %507 = vmatprep.mubr.f32.mxu0 0.0
    %508 = vmatmul.mubr.f32.gmra.mrb[0].mxu0 %v336
    %v509 = vpop.f32.mrb[0].mxu0
    %v510 = vadd.f32 0.0, %v509
    %v511 = vpop.f32.mrb[0].mxu0
    %512 = vmatprep.mubr.f32.mxu0 0.0
    %513 = vmatmul.mubr.f32.gmra.mrb[0].mxu0 %v339
    %v514 = vpop.f32.mrb[0].mxu0
    %v515 = vadd.f32 0.0, %v514
    %v516 = vpop.f32.mrb[0].mxu0
    %517 = vmatprep.mubr.f32.mxu0 0.0
    %518 = vmatmul.mubr.f32.gmra.mrb[0].mxu0 %v342
    %v519 = vpop.f32.mrb[0].mxu0
    %v520 = vadd.f32 0.0, %v519
    %v521 = vpop.f32.mrb[0].mxu0
    %522 = vmatprep.mubr.f32.mxu0 0.0
    %523 = vmatmul.mubr.f32.gmra.mrb[0].mxu0 %v345
    %v524 = vpop.f32.mrb[0].mxu0
    %v525 = vadd.f32 0.0, %v524
    %v526 = vpop.f32.mrb[0].mxu0
    %527 = vmatprep.mubr.f32.mxu0 0.0
    %528 = vmatmul.mubr.f32.gmra.mrb[0].mxu0 %v348
    %v529 = vpop.f32.mrb[0].mxu0
    %v530 = vadd.f32 0.0, %v529
    %v531 = vpop.f32.mrb[0].mxu0
    %532 = vmatprep.mubr.f32.mxu0 0.0
    %533 = vmatmul.mubr.f32.gmra.mrb[0].mxu0 %v351
    %v534 = vpop.f32.mrb[0].mxu0
    %v535 = vadd.f32 0.0, %v534
    %v536 = vpop.f32.mrb[0].mxu0
    %537 = vmatprep.mubr.f32.mxu0 0.0
    %538 = vmatmul.mubr.f32.gmra.mrb[0].mxu0 %v354
    %v539 = vpop.f32.mrb[0].mxu0
    %v540 = vadd.f32 0.0, %v539
    %v541 = vpop.f32.mrb[0].mxu0
    %542 = vmatprep.mubr.f32.mxu0 0.0
    %543 = vmatmul.mubr.f32.gmra.mrb[0].mxu0 %v357
    %v544 = vpop.f32.mrb[0].mxu0
    %v545 = vadd.f32 0.0, %v544
    %v546 = vpop.f32.mrb[0].mxu0
    %547 = vmatprep.mubr.f32.mxu0 0.0
    %548 = vmatmul.mubr.f32.gmra.mrb[0].mxu0 %v360
    %v549 = vpop.f32.mrb[0].mxu0
    %v550 = vadd.f32 0.0, %v549
    %v551 = vpop.f32.mrb[0].mxu0
    %552 = vmatprep.mubr.f32.mxu0 0.0
    %553 = vmatmul.mubr.f32.gmra.mrb[0].mxu0 %v363
    %v554 = vpop.f32.mrb[0].mxu0
    %v555 = vadd.f32 0.0, %v554
    %v556 = vpop.f32.mrb[0].mxu0
    %557 = vmatprep.mubr.f32.mxu0 0.0
    %558 = vmatmul.mubr.f32.gmra.mrb[0].mxu0 %v366
    %v559 = vpop.f32.mrb[0].mxu0
    %v560 = vadd.f32 0.0, %v559
    %v561 = vpop.f32.mrb[0].mxu0
    %562 = vmatprep.mubr.f32.mxu0 0.0
    %563 = vmatmul.mubr.f32.gmra.mrb[0].mxu0 %v369
    %v564 = vpop.f32.mrb[0].mxu0
    %v565 = vadd.f32 0.0, %v564
    %v566 = vpop.f32.mrb[0].mxu0
    %567 = vmatprep.mubr.f32.mxu0 0.0
    %568 = vmatmul.mubr.f32.gmra.mrb[0].mxu0 %v372
    %v569 = vpop.f32.mrb[0].mxu0
    %v570 = vadd.f32 0.0, %v569
    %v571 = vpop.f32.mrb[0].mxu0
    %572 = vmatprep.mubr.f32.mxu0 0.0
    %573 = vmatmul.mubr.f32.gmra.mrb[0].mxu0 %v375
    %v574 = vpop.f32.mrb[0].mxu0
    %v575 = vadd.f32 0.0, %v574
    %v576 = vpop.f32.mrb[0].mxu0
    %577 = vmatprep.mubr.f32.mxu0 0.0
    %578 = vmatmul.mubr.f32.gmra.mrb[0].mxu0 %v378
    %v579 = vpop.f32.mrb[0].mxu0
    %v580 = vadd.f32 0.0, %v579
    %v581 = vpop.f32.mrb[0].mxu0
    %582 = vmatprep.mubr.f32.mxu0 0.0
    %583 = vmatmul.mubr.f32.gmra.mrb[0].mxu0 %v381
    %v584 = vpop.f32.mrb[0].mxu0
    %v585 = vadd.f32 0.0, %v584
    %v586 = vpop.f32.mrb[0].mxu0
    %587 = vmatprep.mubr.f32.mxu0 0.0
    %588 = vmatmul.mubr.f32.gmra.mrb[0].mxu0 %v384
    %v589 = vpop.f32.mrb[0].mxu0
    %v590 = vadd.f32 0.0, %v589
    %v591 = vpop.f32.mrb[0].mxu0
    %592 = vmatprep.mubr.f32.mxu0 0.0
    %593 = vmatmul.mubr.f32.gmra.mrb[0].mxu0 %v387
    %v594 = vpop.f32.mrb[0].mxu0
    %v595 = vadd.f32 0.0, %v594
    %v596 = vpop.f32.mrb[0].mxu0
    %597 = vmatprep.mubr.f32.mxu0 0.0
    %598 = vmatmul.mubr.f32.gmra.mrb[0].mxu0 %v390
    %v599 = vpop.f32.mrb[0].mxu0
    %v600 = vadd.f32 0.0, %v599
    %v601 = vpop.f32.mrb[0].mxu0
    %602 = vmatprep.mubr.f32.mxu0 0.0
    %603 = vmatmul.mubr.f32.gmra.mrb[0].mxu0 %v393
    %v604 = vpop.f32.mrb[0].mxu0
    %v605 = vadd.f32 0.0, %v604
    %v606 = vpop.f32.mrb[0].mxu0
    %607 = vmatprep.mubr.f32.mxu0 0.0
    %608 = vmatmul.mubr.f32.gmra.mrb[0].mxu0 %v396
    %v609 = vpop.f32.mrb[0].mxu0
    %v610 = vadd.f32 0.0, %v609
    %v611 = vpop.f32.mrb[0].mxu0
    %612 = vmatprep.mubr.f32.mxu0 0.0
    %613 = vmatmul.mubr.f32.gmra.mrb[0].mxu0 %v399
    %v614 = vpop.f32.mrb[0].mxu0
    %v615 = vadd.f32 0.0, %v614
    %v616 = vpop.f32.mrb[0].mxu0
    %617 = vmatprep.mubr.f32.mxu0 0.0
    %618 = vmatmul.mubr.f32.gmra.mrb[0].mxu0 %v402
    %v619 = vpop.f32.mrb[0].mxu0
    %v620 = vadd.f32 0.0, %v619
    %v621 = vpop.f32.mrb[0].mxu0
    %622 = vmatprep.mubr.f32.mxu0 0.0
    %623 = vmatmul.mubr.f32.gmra.mrb[0].mxu0 %v405
    %v624 = vpop.f32.mrb[0].mxu0
    %v625 = vadd.f32 0.0, %v624
    %v626 = vpop.f32.mrb[0].mxu0
    %627 = vmatprep.mubr.f32.mxu0 0.0
    %628 = vmatmul.mubr.f32.gmra.mrb[0].mxu0 %v408
    %v629 = vpop.f32.mrb[0].mxu0
    %v630 = vadd.f32 0.0, %v629
    %v631 = vpop.f32.mrb[0].mxu0
    %632 = vmatprep.mubr.f32.mxu0 0.0
    %633 = vmatmul.mubr.f32.gmra.mrb[0].mxu0 %v411
    %v634 = vpop.f32.mrb[0].mxu0
    %v635 = vadd.f32 0.0, %v634
    %v636 = vpop.f32.mrb[0].mxu0
    %637 = vdwg.mxu0
    %v638 = vlaneseq
    %v639 = vshrl.u32 %v638, 7
    %v640 = vsub.s32 0, %v639
    %v641 = vrot.slane %v210, %v640
    %v642 = vlaneseq
    %v643 = vshrl.u32 %v642, 7
    %v644 = vsub.s32 0, %v643
    %v645 = vrot.slane %v224, %v644
    %v646 = vlaneseq
    %v647 = vshrl.u32 %v646, 7
    %v648 = vsub.s32 0, %v647
    %v649 = vrot.slane %v232, %v648
    %v650 = vlaneseq
    %v651 = vshrl.u32 %v650, 7
    %v652 = vsub.s32 0, %v651
    %v653 = vrot.slane %v234, %v652
    %v654 = vlaneseq
    %v655 = vshrl.u32 %v654, 7
    %v656 = vsub.s32 0, %v655
    %v657 = vrot.slane %v217, %v656
    %v658 = vlaneseq
    %v659 = vshrl.u32 %v658, 7
    %v660 = vsub.s32 0, %v659
    %v661 = vrot.slane %v231, %v660
    %v662 = vlaneseq
    %v663 = vshrl.u32 %v662, 7
    %v664 = vsub.s32 0, %v663
    %v665 = vrot.slane %v233, %v664
    %v666 = vlaneseq
    %v667 = vshrl.u32 %v666, 7
    %v668 = vsub.s32 0, %v667
    %v669 = vrot.slane %v235, %v668
    %v670 = vlaneseq
    %v671 = vshrl.u32 %v670, 7
    %v672 = vsub.s32 0, %v671
    %v673 = vrot.slane %v259, %v672
    %v674 = vlaneseq
    %v675 = vshrl.u32 %v674, 7
    %v676 = vsub.s32 0, %v675
    %v677 = vrot.slane %v273, %v676
    %v678 = vlaneseq
    %v679 = vshrl.u32 %v678, 7
    %v680 = vsub.s32 0, %v679
    %v681 = vrot.slane %v281, %v680
    %v682 = vlaneseq
    %v683 = vshrl.u32 %v682, 7
    %v684 = vsub.s32 0, %v683
    %v685 = vrot.slane %v283, %v684
    %v686 = vlaneseq
    %v687 = vshrl.u32 %v686, 7
    %v688 = vsub.s32 0, %v687
    %v689 = vrot.slane %v266, %v688
    %v690 = vlaneseq
    %v691 = vshrl.u32 %v690, 7
    %v692 = vsub.s32 0, %v691
    %v693 = vrot.slane %v280, %v692
    %v694 = vlaneseq
    %v695 = vshrl.u32 %v694, 7
    %v696 = vsub.s32 0, %v695
    %v697 = vrot.slane %v282, %v696
    %v698 = vlaneseq
    %v699 = vshrl.u32 %v698, 7
    %v700 = vsub.s32 0, %v699
    %v701 = vrot.slane %v284, %v700
    %v718 = vadd.f32 %v480, %v641
    %v719 = vadd.f32 %v485, %v641
    %v720 = vadd.f32 %v490, %v645
    %v721 = vadd.f32 %v495, %v645
    %v722 = vadd.f32 %v500, %v649
    %v723 = vadd.f32 %v505, %v649
    %v724 = vadd.f32 %v510, %v653
    %v725 = vadd.f32 %v515, %v653
    %v726 = vadd.f32 %v520, %v657
    %v727 = vadd.f32 %v525, %v657
    %v728 = vadd.f32 %v530, %v661
    %v729 = vadd.f32 %v535, %v661
    %v730 = vadd.f32 %v540, %v665
    %v731 = vadd.f32 %v545, %v665
    %v732 = vadd.f32 %v550, %v669
    %v733 = vadd.f32 %v555, %v669
    %v734 = vadd.f32 %v560, %v673
    %v735 = vadd.f32 %v565, %v673
    %v736 = vadd.f32 %v570, %v677
    %v737 = vadd.f32 %v575, %v677
    %v738 = vadd.f32 %v580, %v681
    %v739 = vadd.f32 %v585, %v681
    %v740 = vadd.f32 %v590, %v685
    %v741 = vadd.f32 %v595, %v685
    %v742 = vadd.f32 %v600, %v689
    %v743 = vadd.f32 %v605, %v689
    %v744 = vadd.f32 %v610, %v693
    %v745 = vadd.f32 %v615, %v693
    %v746 = vadd.f32 %v620, %v697
    %v747 = vadd.f32 %v625, %v697
    %v748 = vadd.f32 %v630, %v701
    %v749 = vadd.f32 %v635, %v701
    %v750 = vtanh.pop %v718
    %v751 = vtanh.pop %v719
    %v752 = vtanh.pop %v720
    %v753 = vtanh.pop %v721
    %v754 = vtanh.pop %v722
    %v755 = vtanh.pop %v723
    %v756 = vtanh.pop %v724
    %v757 = vtanh.pop %v725
    %v758 = vtanh.pop %v726
    %v759 = vtanh.pop %v727
    %v760 = vtanh.pop %v728
    %v761 = vtanh.pop %v729
    %v762 = vtanh.pop %v730
    %v763 = vtanh.pop %v731
    %v764 = vtanh.pop %v732
    %v765 = vtanh.pop %v733
    %v766 = vtanh.pop %v734
    %v767 = vtanh.pop %v735
    %v768 = vtanh.pop %v736
    %v769 = vtanh.pop %v737
    %v770 = vtanh.pop %v738
    %v771 = vtanh.pop %v739
    %v772 = vtanh.pop %v740
    %v773 = vtanh.pop %v741
    %v774 = vtanh.pop %v742
    %v775 = vtanh.pop %v743
    %v776 = vtanh.pop %v744
    %v777 = vtanh.pop %v745
    %v778 = vtanh.pop %v746
    %v779 = vtanh.pop %v747
    %v780 = vtanh.pop %v748
    %v781 = vtanh.pop %v749
    %v783 = vlaneseq
    %v784 = vshrl.u32 %v783, 7
    %v785 = vsub.s32 0, %v784
    %v786 = vrot.slane %v96, %v785
    %v788 = vmul.f32 %v750, %v786
    %v789 = vmul.f32 %v751, %v786
    %v790 = vmul.f32 %v752, %v786
    %v791 = vmul.f32 %v753, %v786
    %v792 = vmul.f32 %v754, %v786
    %v793 = vmul.f32 %v755, %v786
    %v794 = vmul.f32 %v756, %v786
    %v795 = vmul.f32 %v757, %v786
    %v796 = vmul.f32 %v758, %v786
    %v797 = vmul.f32 %v759, %v786
    %v798 = vmul.f32 %v760, %v786
    %v799 = vmul.f32 %v761, %v786
    %v800 = vmul.f32 %v762, %v786
    %v801 = vmul.f32 %v763, %v786
    %v802 = vmul.f32 %v764, %v786
    %v803 = vmul.f32 %v765, %v786
    %v804 = vmul.f32 %v766, %v786
    %v805 = vmul.f32 %v767, %v786
    %v806 = vmul.f32 %v768, %v786
    %v807 = vmul.f32 %v769, %v786
    %v808 = vmul.f32 %v770, %v786
    %v809 = vmul.f32 %v771, %v786
    %v810 = vmul.f32 %v772, %v786
    %v811 = vmul.f32 %v773, %v786
    %v812 = vmul.f32 %v774, %v786
    %v813 = vmul.f32 %v775, %v786
    %v814 = vmul.f32 %v776, %v786
    %v815 = vmul.f32 %v777, %v786
    %v816 = vmul.f32 %v778, %v786
    %v817 = vmul.f32 %v779, %v786
    %v818 = vmul.f32 %v780, %v786
    %v819 = vmul.f32 %v781, %v786
    %v820 = vsel %vm103, %v788, 0.0
    %821 = vadd.xlane.f32.xlu0 %v820
    %v822 = vpop.xlane.xlu0 %821
    %v823 = vsel %vm103, %v789, 0.0
    %824 = vadd.xlane.f32.xlu0 %v823
    %v825 = vpop.xlane.xlu0 %824
    %v826 = vsel %vm103, %v790, 0.0
    %827 = vadd.xlane.f32.xlu0 %v826
    %v828 = vpop.xlane.xlu0 %827
    %v829 = vsel %vm103, %v791, 0.0
    %830 = vadd.xlane.f32.xlu0 %v829
    %v831 = vpop.xlane.xlu0 %830
    %v832 = vsel %vm103, %v792, 0.0
    %833 = vadd.xlane.f32.xlu0 %v832
    %v834 = vpop.xlane.xlu0 %833
    %v835 = vsel %vm103, %v793, 0.0
    %836 = vadd.xlane.f32.xlu0 %v835
    %v837 = vpop.xlane.xlu0 %836
    %v838 = vsel %vm103, %v794, 0.0
    %839 = vadd.xlane.f32.xlu0 %v838
    %v840 = vpop.xlane.xlu0 %839
    %v841 = vsel %vm103, %v795, 0.0
    %842 = vadd.xlane.f32.xlu0 %v841
    %v843 = vpop.xlane.xlu0 %842
    %v844 = vsel %vm103, %v796, 0.0
    %845 = vadd.xlane.f32.xlu0 %v844
    %v846 = vpop.xlane.xlu0 %845
    %v847 = vsel %vm103, %v797, 0.0
    %848 = vadd.xlane.f32.xlu0 %v847
    %v849 = vpop.xlane.xlu0 %848
    %v850 = vsel %vm103, %v798, 0.0
    %851 = vadd.xlane.f32.xlu0 %v850
    %v852 = vpop.xlane.xlu0 %851
    %v853 = vsel %vm103, %v799, 0.0
    %854 = vadd.xlane.f32.xlu0 %v853
    %v855 = vpop.xlane.xlu0 %854
    %v856 = vsel %vm103, %v800, 0.0
    %857 = vadd.xlane.f32.xlu0 %v856
    %v858 = vpop.xlane.xlu0 %857
    %v859 = vsel %vm103, %v801, 0.0
    %860 = vadd.xlane.f32.xlu0 %v859
    %v861 = vpop.xlane.xlu0 %860
    %v862 = vsel %vm103, %v802, 0.0
    %863 = vadd.xlane.f32.xlu0 %v862
    %v864 = vpop.xlane.xlu0 %863
    %v865 = vsel %vm103, %v803, 0.0
    %866 = vadd.xlane.f32.xlu0 %v865
    %v867 = vpop.xlane.xlu0 %866
    %v868 = vsel %vm103, %v804, 0.0
    %869 = vadd.xlane.f32.xlu0 %v868
    %v870 = vpop.xlane.xlu0 %869
    %v871 = vsel %vm103, %v805, 0.0
    %872 = vadd.xlane.f32.xlu0 %v871
    %v873 = vpop.xlane.xlu0 %872
    %v874 = vsel %vm103, %v806, 0.0
    %875 = vadd.xlane.f32.xlu0 %v874
    %v876 = vpop.xlane.xlu0 %875
    %v877 = vsel %vm103, %v807, 0.0
    %878 = vadd.xlane.f32.xlu0 %v877
    %v879 = vpop.xlane.xlu0 %878
    %v880 = vsel %vm103, %v808, 0.0
    %881 = vadd.xlane.f32.xlu0 %v880
    %v882 = vpop.xlane.xlu0 %881
    %v883 = vsel %vm103, %v809, 0.0
    %884 = vadd.xlane.f32.xlu0 %v883
    %v885 = vpop.xlane.xlu0 %884
    %v886 = vsel %vm103, %v810, 0.0
    %887 = vadd.xlane.f32.xlu0 %v886
    %v888 = vpop.xlane.xlu0 %887
    %v889 = vsel %vm103, %v811, 0.0
    %890 = vadd.xlane.f32.xlu0 %v889
    %v891 = vpop.xlane.xlu0 %890
    %v892 = vsel %vm103, %v812, 0.0
    %893 = vadd.xlane.f32.xlu0 %v892
    %v894 = vpop.xlane.xlu0 %893
    %v895 = vsel %vm103, %v813, 0.0
    %896 = vadd.xlane.f32.xlu0 %v895
    %v897 = vpop.xlane.xlu0 %896
    %v898 = vsel %vm103, %v814, 0.0
    %899 = vadd.xlane.f32.xlu0 %v898
    %v900 = vpop.xlane.xlu0 %899
    %v901 = vsel %vm103, %v815, 0.0
    %902 = vadd.xlane.f32.xlu0 %v901
    %v903 = vpop.xlane.xlu0 %902
    %v904 = vsel %vm103, %v816, 0.0
    %905 = vadd.xlane.f32.xlu0 %v904
    %v906 = vpop.xlane.xlu0 %905
    %v907 = vsel %vm103, %v817, 0.0
    %908 = vadd.xlane.f32.xlu0 %v907
    %v909 = vpop.xlane.xlu0 %908
    %v910 = vsel %vm103, %v818, 0.0
    %911 = vadd.xlane.f32.xlu0 %v910
    %v912 = vpop.xlane.xlu0 %911
    %v913 = vsel %vm103, %v819, 0.0
    %914 = vadd.xlane.f32.xlu0 %v913
    %v915 = vpop.xlane.xlu0 %914
    %v948 = vlaneseq
    %v949 = vand.u32 %v948, 127
    %v950 = vlaneseq
    %v951 = vshrl.u32 %v950, 7
    %v952 = vsub.s32 %v949, %v951
    %v953 = vrot.slane %v822, %v952
    %v954 = vadd.s32 %v949, 4294967288
    %v955 = vlaneseq
    %v956 = vshrl.u32 %v955, 7
    %v957 = vsub.s32 %v954, %v956
    %v958 = vrot.slane %v825, %v957
    %vm959 = vcmask 130112
    %v960 = vsel %vm959, %v958, %v953
    %v961 = vlaneseq
    %v962 = vshrl.u32 %v961, 7
    %v963 = vsub.s32 %v949, %v962
    %v964 = vrot.slane %v828, %v963
    %v965 = vlaneseq
    %v966 = vshrl.u32 %v965, 7
    %v967 = vsub.s32 %v954, %v966
    %v968 = vrot.slane %v831, %v967
    %v969 = vsel %vm959, %v968, %v964
    %v970 = vlaneseq
    %v971 = vshrl.u32 %v970, 7
    %v972 = vsub.s32 %v949, %v971
    %v973 = vrot.slane %v834, %v972
    %v974 = vlaneseq
    %v975 = vshrl.u32 %v974, 7
    %v976 = vsub.s32 %v954, %v975
    %v977 = vrot.slane %v837, %v976
    %v978 = vsel %vm959, %v977, %v973
    %v979 = vlaneseq
    %v980 = vshrl.u32 %v979, 7
    %v981 = vsub.s32 %v949, %v980
    %v982 = vrot.slane %v840, %v981
    %v983 = vlaneseq
    %v984 = vshrl.u32 %v983, 7
    %v985 = vsub.s32 %v954, %v984
    %v986 = vrot.slane %v843, %v985
    %v987 = vsel %vm959, %v986, %v982
    %v988 = vlaneseq
    %v989 = vshrl.u32 %v988, 7
    %v990 = vsub.s32 %v949, %v989
    %v991 = vrot.slane %v846, %v990
    %v992 = vlaneseq
    %v993 = vshrl.u32 %v992, 7
    %v994 = vsub.s32 %v954, %v993
    %v995 = vrot.slane %v849, %v994
    %v996 = vsel %vm959, %v995, %v991
    %v997 = vlaneseq
    %v998 = vshrl.u32 %v997, 7
    %v999 = vsub.s32 %v949, %v998
    %v1000 = vrot.slane %v852, %v999
    %v1001 = vlaneseq
    %v1002 = vshrl.u32 %v1001, 7
    %v1003 = vsub.s32 %v954, %v1002
    %v1004 = vrot.slane %v855, %v1003
    %v1005 = vsel %vm959, %v1004, %v1000
    %v1006 = vlaneseq
    %v1007 = vshrl.u32 %v1006, 7
    %v1008 = vsub.s32 %v949, %v1007
    %v1009 = vrot.slane %v858, %v1008
    %v1010 = vlaneseq
    %v1011 = vshrl.u32 %v1010, 7
    %v1012 = vsub.s32 %v954, %v1011
    %v1013 = vrot.slane %v861, %v1012
    %v1014 = vsel %vm959, %v1013, %v1009
    %v1015 = vlaneseq
    %v1016 = vshrl.u32 %v1015, 7
    %v1017 = vsub.s32 %v949, %v1016
    %v1018 = vrot.slane %v864, %v1017
    %v1019 = vlaneseq
    %v1020 = vshrl.u32 %v1019, 7
    %v1021 = vsub.s32 %v954, %v1020
    %v1022 = vrot.slane %v867, %v1021
    %v1023 = vsel %vm959, %v1022, %v1018
    %v1024 = vlaneseq
    %v1025 = vshrl.u32 %v1024, 7
    %v1026 = vsub.s32 %v949, %v1025
    %v1027 = vrot.slane %v870, %v1026
    %v1028 = vlaneseq
    %v1029 = vshrl.u32 %v1028, 7
    %v1030 = vsub.s32 %v954, %v1029
    %v1031 = vrot.slane %v873, %v1030
    %v1032 = vsel %vm959, %v1031, %v1027
    %v1033 = vlaneseq
    %v1034 = vshrl.u32 %v1033, 7
    %v1035 = vsub.s32 %v949, %v1034
    %v1036 = vrot.slane %v876, %v1035
    %v1037 = vlaneseq
    %v1038 = vshrl.u32 %v1037, 7
    %v1039 = vsub.s32 %v954, %v1038
    %v1040 = vrot.slane %v879, %v1039
    %v1041 = vsel %vm959, %v1040, %v1036
    %v1042 = vlaneseq
    %v1043 = vshrl.u32 %v1042, 7
    %v1044 = vsub.s32 %v949, %v1043
    %v1045 = vrot.slane %v882, %v1044
    %v1046 = vlaneseq
    %v1047 = vshrl.u32 %v1046, 7
    %v1048 = vsub.s32 %v954, %v1047
    %v1049 = vrot.slane %v885, %v1048
    %v1050 = vsel %vm959, %v1049, %v1045
    %v1051 = vlaneseq
    %v1052 = vshrl.u32 %v1051, 7
    %v1053 = vsub.s32 %v949, %v1052
    %v1054 = vrot.slane %v888, %v1053
    %v1055 = vlaneseq
    %v1056 = vshrl.u32 %v1055, 7
    %v1057 = vsub.s32 %v954, %v1056
    %v1058 = vrot.slane %v891, %v1057
    %v1059 = vsel %vm959, %v1058, %v1054
    %v1060 = vlaneseq
    %v1061 = vshrl.u32 %v1060, 7
    %v1062 = vsub.s32 %v949, %v1061
    %v1063 = vrot.slane %v894, %v1062
    %v1064 = vlaneseq
    %v1065 = vshrl.u32 %v1064, 7
    %v1066 = vsub.s32 %v954, %v1065
    %v1067 = vrot.slane %v897, %v1066
    %v1068 = vsel %vm959, %v1067, %v1063
    %v1069 = vlaneseq
    %v1070 = vshrl.u32 %v1069, 7
    %v1071 = vsub.s32 %v949, %v1070
    %v1072 = vrot.slane %v900, %v1071
    %v1073 = vlaneseq
    %v1074 = vshrl.u32 %v1073, 7
    %v1075 = vsub.s32 %v954, %v1074
    %v1076 = vrot.slane %v903, %v1075
    %v1077 = vsel %vm959, %v1076, %v1072
    %v1078 = vlaneseq
    %v1079 = vshrl.u32 %v1078, 7
    %v1080 = vsub.s32 %v949, %v1079
    %v1081 = vrot.slane %v906, %v1080
    %v1082 = vlaneseq
    %v1083 = vshrl.u32 %v1082, 7
    %v1084 = vsub.s32 %v954, %v1083
    %v1085 = vrot.slane %v909, %v1084
    %v1086 = vsel %vm959, %v1085, %v1081
    %v1087 = vlaneseq
    %v1088 = vshrl.u32 %v1087, 7
    %v1089 = vsub.s32 %v949, %v1088
    %v1090 = vrot.slane %v912, %v1089
    %v1091 = vlaneseq
    %v1092 = vshrl.u32 %v1091, 7
    %v1093 = vsub.s32 %v954, %v1092
    %v1094 = vrot.slane %v915, %v1093
    %v1095 = vsel %vm959, %v1094, %v1090
    %vm1096 = vcmask 1041409
    %v1097 = vsel %vm1096, %v969, %v960
    %vm1098 = vcmask 1042434
    %v1099 = vsel %vm1098, %v978, %v1097
    %vm1100 = vcmask 1043459
    %v1101 = vsel %vm1100, %v987, %v1099
    %vm1102 = vcmask 1044484
    %v1103 = vsel %vm1102, %v996, %v1101
    %vm1104 = vcmask 1045509
    %v1105 = vsel %vm1104, %v1005, %v1103
    %vm1106 = vcmask 1046534
    %v1107 = vsel %vm1106, %v1014, %v1105
    %vm1108 = vcmask 1047559
    %v1109 = vsel %vm1108, %v1023, %v1107
    %v1110 = vsel %vm1096, %v1041, %v1032
    %v1111 = vsel %vm1098, %v1050, %v1110
    %v1112 = vsel %vm1100, %v1059, %v1111
    %v1113 = vsel %vm1102, %v1068, %v1112
    %v1114 = vsel %vm1104, %v1077, %v1113
    %v1115 = vsel %vm1106, %v1086, %v1114
    %v1116 = vsel %vm1108, %v1095, %v1115
    %vm1119 = vcmask 130048
    %1120 = vst.msk [vmem:[#allocation2] sm:$0xff] %vm1119, %v1109
    %1121 = vst.msk [vmem:[#allocation2 + $0x8] sm:$0xff] %vm1119, %v1116
    %v1122 = vld [vmem:[#allocation8] sm:$0xff]
    %v1123 = vld [vmem:[#allocation8 + $0x8] sm:$0xff]
    %vm1124 = vcmp.ne.s32.totalorder %v1122, 0
    %vm1125 = vcmp.ne.s32.totalorder %v1123, 0
    %v1126 = vld [vmem:[#allocation2] sm:$0xff]
    %v1127 = vld [vmem:[#allocation2 + $0x8] sm:$0xff]
    %v1128 = vsel %vm1124, -1e+30, %v1126
    %v1129 = vsel %vm1125, -1e+30, %v1127
    %v1130 = vsel %vm1119, %v1128, -inf
    %1131 = vmax.xlane.f32.xlu0 %v1130
    %v1132 = vpop.xlane.xlu0 %1131
    %v1133 = vsel %vm1119, %v1129, -inf
    %1134 = vmax.xlane.f32.xlu0 %v1133
    %v1135 = vpop.xlane.xlu0 %1134
    %v1136 = vsub.f32 %v1128, %v1132
    %v1137 = vsub.f32 %v1129, %v1135
    %v1138 = vmul.f32 %v1136, 1.442695
    %v1139 = vpow.pop %v1138
    %v1140 = vmul.f32 %v1137, 1.442695
    %v1141 = vpow.pop %v1140
    %v1142 = vsel %vm1119, %v1139, 0.0
    %1143 = vadd.xlane.f32.xlu0 %v1142
    %v1144 = vpop.xlane.xlu0 %1143
    %v1145 = vsel %vm1119, %v1141, 0.0
    %1146 = vadd.xlane.f32.xlu0 %v1145
    %v1147 = vpop.xlane.xlu0 %1146
    %v1148 = vrcp.pop %v1144
    %v1149 = vmul.f32 %v1139, %v1148
    %v1150 = vrcp.pop %v1147
    %v1151 = vmul.f32 %v1141, %v1150
    %1152 = vst.msk [vmem:[#allocation12] sm:$0xff] %vm1119, %v1149
    %1153 = vst.msk [vmem:[#allocation12 + $0x8] sm:$0xff] %vm1119, %v1151
    // Predicated region
    $region46: #{tpu_custom_call.1} parent=1 // pred_check
      _
    $region47: #{tpu_custom_call.1} parent=1 // pred_check_branch
      %1155 = sbr.rel (0) target = $region49
    $region48: #{tpu_custom_call.1} parent=1 // pred_region
      %s1157 = ssub.s32 256, 256
      %1158 = vsyncadd [#allocation5], %s1157
      %s1159 = sshll.u32 [#allocation12], 4
      %s1160 = int_to_ptr.vmem [resolvable:$true] %s1159
      %1165 = dma.vmem_to_hbm [thread:$0]  %s1160, 256, %s6, [#allocation5], 128, 128, 8
    $region49: #{tpu_custom_call.1} parent=1 // pred_fallthru
      _
    // Predicated region
    $region50: #{tpu_custom_call.1} parent=1 // pred_check
      _
    $region51: #{tpu_custom_call.1} parent=1 // pred_check_branch
      %1167 = sbr.rel (0) target = $region53
    $region52: #{tpu_custom_call.1} parent=1 // pred_region
      %1168 = dma.done [#allocation5], 256
    $region53: #{tpu_custom_call.1} parent=1 // pred_fallthru
      _
    %1169 = vsyncpa [#allocation4], 1
    %1170 = vsyncpa [#allocation7], 1
    %1171 = vsyncpa [#allocation10], 1
    %1172 = vsyncpa [#allocation5], 1

</llo_original>
